<compile_context>
chip_gen: v5e
topology: v5e:2x2
jax: 0.10.0
libtpu: 0.0.40
codegen_flags: <defaults>
</compile_context>

<pallas_src>
import functools

import jax
import jax.numpy as jnp
from jax.experimental import pallas as pl
from jax.experimental.pallas import tpu as pltpu

HID1 = 128
HID2 = 64
N_PAD = 128                       # lane-dense padded logits width
MAX_TILE_B = 2048                 # hard cap on batch rows per grid step
VMEM_BUDGET = 24 * 1024 * 1024    # streaming-buffer budget (safe vs v7x 32 MiB scoped)


def _round_up(x, m):
    return (x + m - 1) // m * m


def _cdiv(a, b):
    return -(-a // b)


def mlp_kernel(x_ref, w1_ref, b1_ref, w2_ref, b2_ref, w3_ref, b3_ref, o_ref):
    # x arrives f32 straight from HBM (no wrapper-side cast/pad pass); the
    # bf16 cast feeding the MXU is free VPU filler.  Accumulation, bias adds
    # and ReLU stay in f32; intermediates are cast to bf16 only to feed the
    # next MXU pass.  Final store is a lane-dense bf16 slab.
    x = x_ref[...].astype(jnp.bfloat16)                               # (TILE_B, d_in)
    h1 = jnp.dot(x, w1_ref[...], preferred_element_type=jnp.float32) + b1_ref[...]
    h1 = jnp.maximum(h1, 0.0)
    h2 = jnp.dot(h1.astype(jnp.bfloat16), w2_ref[...],
                 preferred_element_type=jnp.float32) + b2_ref[...]
    h2 = jnp.maximum(h2, 0.0)
    out = jnp.dot(h2.astype(jnp.bfloat16), w3_ref[...],
                  preferred_element_type=jnp.float32) + b3_ref[...]
    o_ref[...] = out.astype(o_ref.dtype)                              # (TILE_B, 128) bf16


def prepare_params(params):
    """One-time weight preprocessing, hoisted out of the per-call forward path."""
    w1, b1, w2, b2, w3, b3 = params
    num_labels = w3.shape[1]
    w1_bf = w1.astype(jnp.bfloat16)
    w2_bf = w2.astype(jnp.bfloat16)
    # Lane-dense output: zero-pad the logits dimension to 128 lanes.
    w3_pad = jnp.zeros((HID2, N_PAD), jnp.bfloat16).at[:, :num_labels].set(
        w3.astype(jnp.bfloat16))
    b3_pad = jnp.zeros((1, N_PAD), jnp.float32).at[:, :num_labels].set(
        b3.astype(jnp.float32))
    b1_2d = b1.reshape(1, HID1).astype(jnp.float32)
    b2_2d = b2.reshape(1, HID2).astype(jnp.float32)
    return (w1_bf, b1_2d, w2_bf, b2_2d, w3_pad, b3_pad), num_labels


def _choose_tile(batch, d_in):
    """Batch-tile rows per grid step: VMEM-budgeted, multiple of 8, >=2 steps."""
    # Double-buffered streaming buffers: f32 x tile + bf16 out tile; resident
    # weights conservatively counted as double-buffered too.
    weight_bytes = (2 * 2 * (d_in * HID1 + HID1 * HID2 + HID2 * N_PAD)
                    + 2 * 4 * (HID1 + HID2 + N_PAD))
    per_row = 2 * (d_in * 4 + N_PAD * 2)
    max_tile = max(8, min(MAX_TILE_B,
                          ((VMEM_BUDGET - weight_bytes) // per_row) // 8 * 8))
    # TODO(synk): for very large d_in (weight_bytes ~ VMEM_BUDGET, e.g. 224x224
    # inputs) add a K grid axis over d_in with an f32 accumulator scratch
    # instead of collapsing tile_b to 8.
    if batch <= 8:
        return 8
    # >= 2 grid steps so ("parallel",) actually feeds both v7x TensorCores;
    # tile sized so the last (partial) block wastes < 8 rows of work.
    n_steps = max(2, _cdiv(batch, max_tile))
    return max(8, min(max_tile, _round_up(_cdiv(batch, n_steps), 8)))


def pytorch_classifier_forward(image, prepared, *, num_labels):
    """image: (B, H, W) or (B, H*W) f32. Returns (B, num_labels) f32 logits."""
    w1_bf, b1_2d, w2_bf, b2_2d, w3_pad, b3_pad = prepared
    d_in = w1_bf.shape[0]

    x = image.reshape(-1, d_in)                 # image.view(-1, width*height)
    batch = x.shape[0]

    tile_b = _choose_tile(batch, d_in)
    grid = (_cdiv(batch, tile_b),)              # partial last block handled by Pallas

    # Constant block index -> weights/biases stay resident in VMEM across steps.
    resident = lambda a: pl.BlockSpec(a.shape, lambda i: (0,) * a.ndim)

    flops = 2 * grid[0] * tile_b * (d_in * HID1 + HID1 * HID2 + HID2 * N_PAD)
    bytes_accessed = (x.size * 4                                       # f32 x stream
                      + (w1_bf.size + w2_bf.size + w3_pad.size) * 2    # bf16 weights
                      + (HID1 + HID2 + N_PAD) * 4                      # f32 biases
                      + batch * N_PAD * 2)                             # bf16 output slab

    out = pl.pallas_call(
        mlp_kernel,
        out_shape=jax.ShapeDtypeStruct((batch, N_PAD), jnp.bfloat16),
        grid_spec=pltpu.PrefetchScalarGridSpec(
            num_scalar_prefetch=0,
            grid=grid,
            in_specs=[
                pl.BlockSpec((tile_b, d_in), lambda i: (i, 0)),   # f32 x tile
                resident(w1_bf), resident(b1_2d),
                resident(w2_bf), resident(b2_2d),
                resident(w3_pad), resident(b3_pad),
            ],
            out_specs=pl.BlockSpec((tile_b, N_PAD), lambda i: (i, 0)),
        ),
        compiler_params=pltpu.CompilerParams(
            dimension_semantics=("parallel",),          # megacore on v7x
            vmem_limit_bytes=32 * 1024 * 1024),
        cost_estimate=pl.CostEstimate(
            flops=flops, bytes_accessed=bytes_accessed, transcendentals=0),
    )(x, w1_bf, b1_2d, w2_bf, b2_2d, w3_pad, b3_pad)

    # Consumers doing argmax/softmax/cross-entropy could consume the lane-dense
    # bf16 slab directly (or fuse the reduction into the kernel); the slice +
    # f32 cast is kept only for nn.Module API parity.
    return out[:, :num_labels].astype(jnp.float32)


def init_params(key, width, height, num_labels):
    """Deterministic init mirroring nn.Linear default (U[-1/sqrt(fan_in), +])."""
    d_in = width * height
    dims = [(d_in, HID1), (HID1, HID2), (HID2, num_labels)]
    params = []
    for (fan_in, fan_out) in dims:
        key, kw, kb = jax.random.split(key, 3)
        bound = 1.0 / jnp.sqrt(float(fan_in))
        # Stored as (in, out) == PyTorch weight (out, in) transposed.
        w = jax.random.uniform(kw, (fan_in, fan_out), jnp.float32, -bound, bound)
        b = jax.random.uniform(kb, (fan_out,), jnp.float32, -bound, bound)
        params += [w, b]
    return tuple(params)


if __name__ == "__main__":
    key = jax.random.PRNGKey(0)
    batch, width, height = 2, 16, 16
    legal_labels = list(range(10))      # e.g. digit classification
    n_labels = len(legal_labels)

    k_img, k_par = jax.random.split(key)
    image = jax.random.uniform(k_img, (batch, height, width), jnp.float32)
    params = init_params(k_par, width, height, n_labels)

    # Weight preprocessing hoisted out of the forward path (done once).
    prepared, num_labels = prepare_params(params)
    fwd = jax.jit(functools.partial(pytorch_classifier_forward,
                                    num_labels=num_labels))

    logits = jax.block_until_ready(fwd(image, prepared))
    assert logits.shape == (batch, n_labels)

    # Pure-JAX reference with the same bf16 operand quantization / f32 accum /
    # bf16 output rounding.
    w1, b1, w2, b2, w3, b3 = params
    xr = image.reshape(-1, width * height).astype(jnp.bfloat16)
    h1 = jnp.maximum(
        jnp.dot(xr, w1.astype(jnp.bfloat16),
                preferred_element_type=jnp.float32) + b1, 0.0)
    h2 = jnp.maximum(
        jnp.dot(h1.astype(jnp.bfloat16), w2.astype(jnp.bfloat16),
                preferred_element_type=jnp.float32) + b2, 0.0)
    ref = jnp.dot(h2.astype(jnp.bfloat16), w3.astype(jnp.bfloat16),
                  preferred_element_type=jnp.float32) + b3
    ref_q = ref.astype(jnp.bfloat16).astype(jnp.float32)

    assert jnp.allclose(logits, ref_q, atol=5e-3, rtol=5e-3), (
        jnp.max(jnp.abs(logits - ref_q)))

    # Sanity: bf16 streaming stays close to the full-f32 PyTorch-style forward.
    ref32 = jnp.maximum(image.reshape(-1, width * height) @ w1 + b1, 0.0)
    ref32 = jnp.maximum(ref32 @ w2 + b2, 0.0)
    ref32 = ref32 @ w3 + b3
    assert jnp.allclose(logits, ref32, atol=5e-2, rtol=5e-2)

    # TODO(synk): train()/classify() (Adam, CrossEntropyLoss, DataLoader,
    # dataToTensor/labelToTensor) are host-side training utilities and are
    # intentionally not kernelized.
    print("KERNEL_OK")
</pallas_src>

<mosaic_0001>
module attributes {stable_mosaic.version = 11 : i64} {
  func.func @mlp_kernel(%arg0: i32, %arg1: memref<8x256xf32, #tpu.memory_space<vmem>>, %arg2: memref<256x128xbf16, #tpu.memory_space<vmem>>, %arg3: memref<1x128xf32, #tpu.memory_space<vmem>>, %arg4: memref<128x64xbf16, #tpu.memory_space<vmem>>, %arg5: memref<1x64xf32, #tpu.memory_space<vmem>>, %arg6: memref<64x128xbf16, #tpu.memory_space<vmem>>, %arg7: memref<1x128xf32, #tpu.memory_space<vmem>>, %arg8: memref<8x128xbf16, #tpu.memory_space<vmem>>) attributes {dimension_semantics = [#tpu.dimension_semantics<parallel>], iteration_bounds = array<i64: 1>, scalar_prefetch = 0 : i64, scratch_operands = 0 : i64, tpu.core_type = #tpu.core_type<tc>, window_params = [{transform_indices = @transform_0, window_bounds = array<i64: 8, 256>}, {pipeline_mode = #tpu.pipeline_mode<synchronous>, transform_indices = @transform_1, window_bounds = array<i64: 256, 128>}, {pipeline_mode = #tpu.pipeline_mode<synchronous>, transform_indices = @transform_2, window_bounds = array<i64: 1, 128>}, {pipeline_mode = #tpu.pipeline_mode<synchronous>, transform_indices = @transform_3, window_bounds = array<i64: 128, 64>}, {pipeline_mode = #tpu.pipeline_mode<synchronous>, transform_indices = @transform_4, window_bounds = array<i64: 1, 64>}, {pipeline_mode = #tpu.pipeline_mode<synchronous>, transform_indices = @transform_5, window_bounds = array<i64: 64, 128>}, {pipeline_mode = #tpu.pipeline_mode<synchronous>, transform_indices = @transform_6, window_bounds = array<i64: 1, 128>}, {transform_indices = @transform_7, window_bounds = array<i64: 8, 128>}]} {
    %c0 = arith.constant 0 : index
    %c0_0 = arith.constant 0 : index
    %0 = vector.load %arg1[%c0, %c0_0] : memref<8x256xf32, #tpu.memory_space<vmem>>, vector<8x256xf32>
    %1 = arith.truncf %0 : vector<8x256xf32> to vector<8x256xbf16>
    %c0_1 = arith.constant 0 : index
    %c0_2 = arith.constant 0 : index
    %2 = vector.load %arg2[%c0_1, %c0_2] : memref<256x128xbf16, #tpu.memory_space<vmem>>, vector<256x128xbf16>
    %cst = arith.constant dense<0.000000e+00> : vector<8x128xf32>
    %3 = tpu.matmul %1, %2, %cst {dimension_numbers = #tpu.dot_dimension_numbers<[1], [0], [0], [1], [0, 0, 1, 1], [], []>} : vector<8x256xbf16>, vector<256x128xbf16>, vector<8x128xf32> -> vector<8x128xf32>
    %c0_3 = arith.constant 0 : index
    %c0_4 = arith.constant 0 : index
    %4 = vector.load %arg3[%c0_3, %c0_4] : memref<1x128xf32, #tpu.memory_space<vmem>>, vector<1x128xf32>
    %5 = vector.broadcast %4 : vector<1x128xf32> to vector<8x128xf32>
    %6 = arith.addf %3, %5 : vector<8x128xf32>
    %cst_5 = arith.constant 0.000000e+00 : f32
    %7 = vector.broadcast %cst_5 : f32 to vector<8x128xf32>
    %8 = arith.maximumf %6, %7 : vector<8x128xf32>
    %9 = arith.truncf %8 : vector<8x128xf32> to vector<8x128xbf16>
    %c0_6 = arith.constant 0 : index
    %c0_7 = arith.constant 0 : index
    %10 = vector.load %arg4[%c0_6, %c0_7] : memref<128x64xbf16, #tpu.memory_space<vmem>>, vector<128x64xbf16>
    %cst_8 = arith.constant dense<0.000000e+00> : vector<8x64xf32>
    %11 = tpu.matmul %9, %10, %cst_8 {dimension_numbers = #tpu.dot_dimension_numbers<[1], [0], [0], [1], [0, 0, 1, 1], [], []>} : vector<8x128xbf16>, vector<128x64xbf16>, vector<8x64xf32> -> vector<8x64xf32>
    %c0_9 = arith.constant 0 : index
    %c0_10 = arith.constant 0 : index
    %12 = vector.load %arg5[%c0_9, %c0_10] : memref<1x64xf32, #tpu.memory_space<vmem>>, vector<1x64xf32>
    %13 = vector.broadcast %12 : vector<1x64xf32> to vector<8x64xf32>
    %14 = arith.addf %11, %13 : vector<8x64xf32>
    %cst_11 = arith.constant 0.000000e+00 : f32
    %15 = vector.broadcast %cst_11 : f32 to vector<8x64xf32>
    %16 = arith.maximumf %14, %15 : vector<8x64xf32>
    %17 = arith.truncf %16 : vector<8x64xf32> to vector<8x64xbf16>
    %c0_12 = arith.constant 0 : index
    %c0_13 = arith.constant 0 : index
    %18 = vector.load %arg6[%c0_12, %c0_13] : memref<64x128xbf16, #tpu.memory_space<vmem>>, vector<64x128xbf16>
    %cst_14 = arith.constant dense<0.000000e+00> : vector<8x128xf32>
    %19 = tpu.matmul %17, %18, %cst_14 {dimension_numbers = #tpu.dot_dimension_numbers<[1], [0], [0], [1], [0, 0, 1, 1], [], []>} : vector<8x64xbf16>, vector<64x128xbf16>, vector<8x128xf32> -> vector<8x128xf32>
    %c0_15 = arith.constant 0 : index
    %c0_16 = arith.constant 0 : index
    %20 = vector.load %arg7[%c0_15, %c0_16] : memref<1x128xf32, #tpu.memory_space<vmem>>, vector<1x128xf32>
    %21 = vector.broadcast %20 : vector<1x128xf32> to vector<8x128xf32>
    %22 = arith.addf %19, %21 : vector<8x128xf32>
    %23 = arith.truncf %22 : vector<8x128xf32> to vector<8x128xbf16>
    %c0_17 = arith.constant 0 : index
    %c0_18 = arith.constant 0 : index
    %24 = vector.load %arg8[%c0_17, %c0_18] : memref<8x128xbf16, #tpu.memory_space<vmem>>, vector<8x128xbf16>
    tpu.vector_store %arg8[%c0_17, %c0_18], %23 {strides = array<i32>} : memref<8x128xbf16, #tpu.memory_space<vmem>>, vector<8x128xbf16>,
    return
  }
  func.func @transform_0(%arg0: i32) -> (i32, i32) {
    %c0_i32 = arith.constant 0 : i32
    %c0_i32_0 = arith.constant 0 : i32
    return %arg0, %c0_i32 : i32, i32
  }
  func.func @transform_1(%arg0: i32) -> (i32, i32) {
    %c0_i32 = arith.constant 0 : i32
    %c0_i32_0 = arith.constant 0 : i32
    %c0_i32_1 = arith.constant 0 : i32
    return %c0_i32, %c0_i32_0 : i32, i32
  }
  func.func @transform_2(%arg0: i32) -> (i32, i32) {
    %c0_i32 = arith.constant 0 : i32
    %c0_i32_0 = arith.constant 0 : i32
    %c0_i32_1 = arith.constant 0 : i32
    return %c0_i32, %c0_i32_0 : i32, i32
  }
  func.func @transform_3(%arg0: i32) -> (i32, i32) {
    %c0_i32 = arith.constant 0 : i32
    %c0_i32_0 = arith.constant 0 : i32
    %c0_i32_1 = arith.constant 0 : i32
    return %c0_i32, %c0_i32_0 : i32, i32
  }
  func.func @transform_4(%arg0: i32) -> (i32, i32) {
    %c0_i32 = arith.constant 0 : i32
    %c0_i32_0 = arith.constant 0 : i32
    %c0_i32_1 = arith.constant 0 : i32
    return %c0_i32, %c0_i32_0 : i32, i32
  }
  func.func @transform_5(%arg0: i32) -> (i32, i32) {
    %c0_i32 = arith.constant 0 : i32
    %c0_i32_0 = arith.constant 0 : i32
    %c0_i32_1 = arith.constant 0 : i32
    return %c0_i32, %c0_i32_0 : i32, i32
  }
  func.func @transform_6(%arg0: i32) -> (i32, i32) {
    %c0_i32 = arith.constant 0 : i32
    %c0_i32_0 = arith.constant 0 : i32
    %c0_i32_1 = arith.constant 0 : i32
    return %c0_i32, %c0_i32_0 : i32, i32
  }
  func.func @transform_7(%arg0: i32) -> (i32, i32) {
    %c0_i32 = arith.constant 0 : i32
    %c0_i32_0 = arith.constant 0 : i32
    return %arg0, %c0_i32 : i32, i32
  }
}

</mosaic_0001>

<llo_original>
// kernel: pytorch_classifier_forward.1
$region0: #{pytorch_classifier_forward.1}
  #allocation0 [shape = 'u32[]', space=smem, size = 0x4, offset = 0x4, fixed_abs, tag = 'smem constant byte address 0x4 - core index']
  #allocation1 [shape = 'u32[72,128]{1,0:T(1,128)}', space=vmem, size = 0x9000, scoped, tag = 'internal scratch']
  %s0 = inlined_call_operand.vmem [shape: f32[2,256], index: 0, kind: input, shape index: {}]
  %s1 = inlined_call_operand.vmem [shape: bf16[256,128], index: 1, kind: input, shape index: {}]
  %s2 = inlined_call_operand.vmem [shape: f32[1,128], index: 2, kind: input, shape index: {}]
  %s3 = inlined_call_operand.vmem [shape: bf16[128,64], index: 3, kind: input, shape index: {}]
  %s4 = inlined_call_operand.vmem [shape: f32[1,64], index: 4, kind: input, shape index: {}]
  %s5 = inlined_call_operand.hbm [shape: bf16[64,128], index: 5, kind: input, shape index: {}]
  %s6 = inlined_call_operand.vmem [shape: f32[1,128], index: 6, kind: input, shape index: {}]
  %s7 = inlined_call_operand.vmem [shape: bf16[2,128], index: 7, kind: output, shape index: {}]
  %s8 = sld [smem:[#allocation0]]
  $region72: #{pytorch_classifier_forward.1} parent=0
    _
  %s10 = ssub.s32 1, %s8
  %s11 = scalar_select 0, %s10, %s8
  $region1: #{pytorch_classifier_forward.1} parent=0
    #allocation2 [shape = 'u8[16384]{0}', space=vmem, size = 0x4000, scoped, tag = 'input window, operand 5, single buffered']
    #allocation3 [shape = 's32[1]{0}', space=sflag, size = 0x4, scoped, tag = 'scoped memory for pytorch_classifier_forward.1']
    #allocation4 [shape = 'u8[2048]{0}', space=vmem, size = 0x800, scoped, tag = 'output window, operand 0, single buffered']
    %12 = vsyncpa [#allocation3], 0
    // Predicated region
    $region2: #{pytorch_classifier_forward.1} parent=1 // pred_check
      _
    $region3: #{pytorch_classifier_forward.1} parent=1 // pred_check_branch
      %14 = sbr.rel (0) target = $region5
    $region4: #{pytorch_classifier_forward.1} parent=1 // pred_region
      _
    $region5: #{pytorch_classifier_forward.1} parent=1 // pred_fallthru
      _
    // Predicated region
    $region6: #{pytorch_classifier_forward.1} parent=1 // pred_check
      _
    $region7: #{pytorch_classifier_forward.1} parent=1 // pred_check_branch
      %16 = sbr.rel (0) target = $region9
    $region8: #{pytorch_classifier_forward.1} parent=1 // pred_region
      _
    $region9: #{pytorch_classifier_forward.1} parent=1 // pred_fallthru
      _
    // Predicated region
    $region10: #{pytorch_classifier_forward.1} parent=1 // pred_check
      _
    $region11: #{pytorch_classifier_forward.1} parent=1 // pred_check_branch
      %18 = sbr.rel (0) target = $region13
    $region12: #{pytorch_classifier_forward.1} parent=1 // pred_region
      _
    $region13: #{pytorch_classifier_forward.1} parent=1 // pred_fallthru
      _
    // Predicated region
    $region14: #{pytorch_classifier_forward.1} parent=1 // pred_check
      _
    $region15: #{pytorch_classifier_forward.1} parent=1 // pred_check_branch
      %20 = sbr.rel (0) target = $region17
    $region16: #{pytorch_classifier_forward.1} parent=1 // pred_region
      _
    $region17: #{pytorch_classifier_forward.1} parent=1 // pred_fallthru
      _
    // Predicated region
    $region18: #{pytorch_classifier_forward.1} parent=1 // pred_check
      _
    $region19: #{pytorch_classifier_forward.1} parent=1 // pred_check_branch
      %22 = sbr.rel (0) target = $region21
    $region20: #{pytorch_classifier_forward.1} parent=1 // pred_region
      _
    $region21: #{pytorch_classifier_forward.1} parent=1 // pred_fallthru
      _
    // Predicated region
    $region22: #{pytorch_classifier_forward.1} parent=1 // pred_check
      _
    $region23: #{pytorch_classifier_forward.1} parent=1 // pred_check_branch
      %24 = sbr.rel (0) target = $region25
    $region24: #{pytorch_classifier_forward.1} parent=1 // pred_region
      %26 = vsyncadd [#allocation3], 0
      %s27 = sshll.u32 %s5, 4
      %s28 = int_to_ptr.hbm [resolvable:$true] %s27
      %s29 = sshll.u32 [#allocation2], 4
      %s30 = int_to_ptr.vmem [resolvable:$true] %s29
      %35 = dma.hbm_to_vmem [thread:$0]  %s28, 512, %s30, [#allocation3], 64, 64, 4
    $region25: #{pytorch_classifier_forward.1} parent=1 // pred_fallthru
      _
    // Predicated region
    $region26: #{pytorch_classifier_forward.1} parent=1 // pred_check
      _
    $region27: #{pytorch_classifier_forward.1} parent=1 // pred_check_branch
      %37 = sbr.rel (0) target = $region29
    $region28: #{pytorch_classifier_forward.1} parent=1 // pred_region
      _
    $region29: #{pytorch_classifier_forward.1} parent=1 // pred_fallthru
      _
    // Predicated region
    $region30: #{pytorch_classifier_forward.1} parent=1 // pred_check
      _
    $region31: #{pytorch_classifier_forward.1} parent=1 // pred_check_branch
      %39 = sbr.rel (0) target = $region33
    $region32: #{pytorch_classifier_forward.1} parent=1 // pred_region
      %41 = dma.done [#allocation3], 512
    $region33: #{pytorch_classifier_forward.1} parent=1 // pred_fallthru
      _
    %v43 = vld [vmem:[%s0] sm:$0xf]
    %v44 = vld [vmem:[%s0 + $0x4] sm:$0xf]
    %v45 = vld [vmem:[%s0 + $0x8] sm:$0xf]
    %v46 = vld [vmem:[%s0 + $0xc] sm:$0xf]
    %51 = vst [vmem:[#allocation1] ss:$4 sm:$0xff] %v43
    %s52 = scalar_lea.vmem [#allocation1], 1
    %53 = vst [vmem:[%s52] ss:$4 sm:$0xff] %v44
    %s54 = scalar_lea.vmem [#allocation1], 2
    %55 = vst [vmem:[%s54] ss:$4 sm:$0xff] %v45
    %s56 = scalar_lea.vmem [#allocation1], 3
    %57 = vst [vmem:[%s56] ss:$4 sm:$0xff] %v46
    %v58 = vld.sshfl [vmem:[#allocation1] sm:$0xff pattern:$0x73625140]
    %v59 = vld.sshfl [vmem:[#allocation1 + $0x8] sm:$0xff pattern:$0x73625140]
    %v62 = vpack.c.bf16 %v58, %v58
    %v63 = vpack.c.bf16 %v59, %v59
    %v64 = vld [vmem:[%s1] sm:$0xf]
    %v65 = vld [vmem:[%s1 + $0x4] sm:$0xf]
    %v66 = vld [vmem:[%s1 + $0x8] sm:$0xf]
    %v67 = vld [vmem:[%s1 + $0xc] sm:$0xf]
    %v68 = vld [vmem:[%s1 + $0x10] sm:$0xf]
    %v69 = vld [vmem:[%s1 + $0x14] sm:$0xf]
    %v70 = vld [vmem:[%s1 + $0x18] sm:$0xf]
    %v71 = vld [vmem:[%s1 + $0x1c] sm:$0xf]
    %v72 = vld [vmem:[%s1 + $0x20] sm:$0xf]
    %v73 = vld [vmem:[%s1 + $0x24] sm:$0xf]
    %v74 = vld [vmem:[%s1 + $0x28] sm:$0xf]
    %v75 = vld [vmem:[%s1 + $0x2c] sm:$0xf]
    %v76 = vld [vmem:[%s1 + $0x30] sm:$0xf]
    %v77 = vld [vmem:[%s1 + $0x34] sm:$0xf]
    %v78 = vld [vmem:[%s1 + $0x38] sm:$0xf]
    %v79 = vld [vmem:[%s1 + $0x3c] sm:$0xf]
    %v80 = vld [vmem:[%s1 + $0x40] sm:$0xf]
    %v81 = vld [vmem:[%s1 + $0x44] sm:$0xf]
    %v82 = vld [vmem:[%s1 + $0x48] sm:$0xf]
    %v83 = vld [vmem:[%s1 + $0x4c] sm:$0xf]
    %v84 = vld [vmem:[%s1 + $0x50] sm:$0xf]
    %v85 = vld [vmem:[%s1 + $0x54] sm:$0xf]
    %v86 = vld [vmem:[%s1 + $0x58] sm:$0xf]
    %v87 = vld [vmem:[%s1 + $0x5c] sm:$0xf]
    %v88 = vld [vmem:[%s1 + $0x60] sm:$0xf]
    %v89 = vld [vmem:[%s1 + $0x64] sm:$0xf]
    %v90 = vld [vmem:[%s1 + $0x68] sm:$0xf]
    %v91 = vld [vmem:[%s1 + $0x6c] sm:$0xf]
    %v92 = vld [vmem:[%s1 + $0x70] sm:$0xf]
    %v93 = vld [vmem:[%s1 + $0x74] sm:$0xf]
    %v94 = vld [vmem:[%s1 + $0x78] sm:$0xf]
    %v95 = vld [vmem:[%s1 + $0x7c] sm:$0xf]
    %v96 = vld [vmem:[%s2] sm:$0x1]
    %v98 = vperm.slane %v96, 0
    %v132 = vunpack.c.l.b16 %v64
    %v133 = vunpack.c.l.b16 %v65
    %v134 = vunpack.c.l.b16 %v66
    %v135 = vunpack.c.l.b16 %v67
    %v136 = vunpack.c.l.b16 %v68
    %v137 = vunpack.c.l.b16 %v69
    %v138 = vunpack.c.l.b16 %v70
    %v139 = vunpack.c.l.b16 %v71
    %v140 = vunpack.c.l.b16 %v72
    %v141 = vunpack.c.l.b16 %v73
    %v142 = vunpack.c.l.b16 %v74
    %v143 = vunpack.c.l.b16 %v75
    %v144 = vunpack.c.l.b16 %v76
    %v145 = vunpack.c.l.b16 %v77
    %v146 = vunpack.c.l.b16 %v78
    %v147 = vunpack.c.l.b16 %v79
    %v148 = vunpack.c.l.b16 %v80
    %v149 = vunpack.c.l.b16 %v81
    %v150 = vunpack.c.l.b16 %v82
    %v151 = vunpack.c.l.b16 %v83
    %v152 = vunpack.c.l.b16 %v84
    %v153 = vunpack.c.l.b16 %v85
    %v154 = vunpack.c.l.b16 %v86
    %v155 = vunpack.c.l.b16 %v87
    %v156 = vunpack.c.l.b16 %v88
    %v157 = vunpack.c.l.b16 %v89
    %v158 = vunpack.c.l.b16 %v90
    %v159 = vunpack.c.l.b16 %v91
    %v160 = vunpack.c.l.b16 %v92
    %v161 = vunpack.c.l.b16 %v93
    %v162 = vunpack.c.l.b16 %v94
    %v163 = vunpack.c.l.b16 %v95
    %v164 = vpack.c.b16 %v133, %v132
    %v165 = vpack.c.b16 %v135, %v134
    %v166 = vpack.c.b16 %v137, %v136
    %v167 = vpack.c.b16 %v139, %v138
    %v168 = vpack.c.b16 %v141, %v140
    %v169 = vpack.c.b16 %v143, %v142
    %v170 = vpack.c.b16 %v145, %v144
    %v171 = vpack.c.b16 %v147, %v146
    %v172 = vpack.c.b16 %v149, %v148
    %v173 = vpack.c.b16 %v151, %v150
    %v174 = vpack.c.b16 %v153, %v152
    %v175 = vpack.c.b16 %v155, %v154
    %v176 = vpack.c.b16 %v157, %v156
    %v177 = vpack.c.b16 %v159, %v158
    %v178 = vpack.c.b16 %v161, %v160
    %v179 = vpack.c.b16 %v163, %v162
    %196 = vmatpush.bf16.msra.mxu0 %v171
    %197 = vmatpush.bf16.msra.mxu0 %v170
    %198 = vmatpush.bf16.msra.mxu0 %v169
    %199 = vmatpush.bf16.msra.mxu0 %v168
    %200 = vmatpush.bf16.msra.mxu0 %v167
    %201 = vmatpush.bf16.msra.mxu0 %v166
    %202 = vmatpush.bf16.msra.mxu0 %v165
    %203 = vmatpush.bf16.msra.mxu0 %v164
    %204 = vmatmul.bf16.gmra.mxu0 %v62
    %v205 = vpop.f32.mrf.mxu0
    %v206 = vadd.f32 %v98, %v205
    %v207 = vpop.f32.mrf.mxu0
    %208 = vdwg.mxu0
    %209 = vmatpush.bf16.msra.mxu0 %v179
    %210 = vmatpush.bf16.msra.mxu0 %v178
    %211 = vmatpush.bf16.msra.mxu0 %v177
    %212 = vmatpush.bf16.msra.mxu0 %v176
    %213 = vmatpush.bf16.msra.mxu0 %v175
    %214 = vmatpush.bf16.msra.mxu0 %v174
    %215 = vmatpush.bf16.msra.mxu0 %v173
    %216 = vmatpush.bf16.msra.mxu0 %v172
    %217 = vmatmul.bf16.gmra.mxu0 %v63
    %v218 = vpop.f32.mrf.mxu0
    %v219 = vadd.f32 %v206, %v218
    %v220 = vpop.f32.mrf.mxu0
    %221 = vdwg.mxu0
    %v222 = vmax.f32 %v219, 0.0
    %v223 = vpack.c.bf16 %v222, %v222
    %v224 = vld [vmem:[%s3] sm:$0xf]
    %v225 = vld [vmem:[%s3 + $0x4] sm:$0xf]
    %v226 = vld [vmem:[%s3 + $0x8] sm:$0xf]
    %v227 = vld [vmem:[%s3 + $0xc] sm:$0xf]
    %v228 = vld [vmem:[%s3 + $0x10] sm:$0xf]
    %v229 = vld [vmem:[%s3 + $0x14] sm:$0xf]
    %v230 = vld [vmem:[%s3 + $0x18] sm:$0xf]
    %v231 = vld [vmem:[%s3 + $0x1c] sm:$0xf]
    %v232 = vld [vmem:[%s3 + $0x20] sm:$0xf]
    %v233 = vld [vmem:[%s3 + $0x24] sm:$0xf]
    %v234 = vld [vmem:[%s3 + $0x28] sm:$0xf]
    %v235 = vld [vmem:[%s3 + $0x2c] sm:$0xf]
    %v236 = vld [vmem:[%s3 + $0x30] sm:$0xf]
    %v237 = vld [vmem:[%s3 + $0x34] sm:$0xf]
    %v238 = vld [vmem:[%s3 + $0x38] sm:$0xf]
    %v239 = vld [vmem:[%s3 + $0x3c] sm:$0xf]
    %v240 = vld [vmem:[%s4] sm:$0x1]
    %v242 = vperm.slane %v240, 0
    %v260 = vunpack.c.l.b16 %v224
    %v261 = vunpack.c.l.b16 %v225
    %v262 = vunpack.c.l.b16 %v226
    %v263 = vunpack.c.l.b16 %v227
    %v264 = vunpack.c.l.b16 %v228
    %v265 = vunpack.c.l.b16 %v229
    %v266 = vunpack.c.l.b16 %v230
    %v267 = vunpack.c.l.b16 %v231
    %v268 = vunpack.c.l.b16 %v232
    %v269 = vunpack.c.l.b16 %v233
    %v270 = vunpack.c.l.b16 %v234
    %v271 = vunpack.c.l.b16 %v235
    %v272 = vunpack.c.l.b16 %v236
    %v273 = vunpack.c.l.b16 %v237
    %v274 = vunpack.c.l.b16 %v238
    %v275 = vunpack.c.l.b16 %v239
    %v276 = vpack.c.b16 %v261, %v260
    %v277 = vpack.c.b16 %v263, %v262
    %v278 = vpack.c.b16 %v265, %v264
    %v279 = vpack.c.b16 %v267, %v266
    %v280 = vpack.c.b16 %v269, %v268
    %v281 = vpack.c.b16 %v271, %v270
    %v282 = vpack.c.b16 %v273, %v272
    %v283 = vpack.c.b16 %v275, %v274
    %292 = vmatpush.bf16.msra.mxu0 %v283
    %293 = vmatpush.bf16.msra.mxu0 %v282
    %294 = vmatpush.bf16.msra.mxu0 %v281
    %295 = vmatpush.bf16.msra.mxu0 %v280
    %296 = vmatpush.bf16.msra.mxu0 %v279
    %297 = vmatpush.bf16.msra.mxu0 %v278
    %298 = vmatpush.bf16.msra.mxu0 %v277
    %299 = vmatpush.bf16.msra.mxu0 %v276
    %300 = vmatmul.bf16.gmra.mxu0 %v223
    %v301 = vpop.f32.mrf.mxu0
    %v302 = vadd.f32 %v242, %v301
    %v303 = vpop.f32.mrf.mxu0
    %304 = vdwg.mxu0
    %v305 = vmax.f32 %v302, 0.0
    %v306 = vpack.c.bf16 %v305, %v305
    %v307 = vld [vmem:[#allocation2] sm:$0xf]
    %v308 = vld [vmem:[#allocation2 + $0x4] sm:$0xf]
    %v309 = vld [vmem:[#allocation2 + $0x8] sm:$0xf]
    %v310 = vld [vmem:[#allocation2 + $0xc] sm:$0xf]
    %v311 = vld [vmem:[#allocation2 + $0x10] sm:$0xf]
    %v312 = vld [vmem:[#allocation2 + $0x14] sm:$0xf]
    %v313 = vld [vmem:[#allocation2 + $0x18] sm:$0xf]
    %v314 = vld [vmem:[#allocation2 + $0x1c] sm:$0xf]
    %v315 = vld [vmem:[%s6] sm:$0x1]
    %v317 = vperm.slane %v315, 0
    %v327 = vunpack.c.l.b16 %v307
    %v328 = vunpack.c.l.b16 %v308
    %v329 = vunpack.c.l.b16 %v309
    %v330 = vunpack.c.l.b16 %v310
    %v331 = vunpack.c.l.b16 %v311
    %v332 = vunpack.c.l.b16 %v312
    %v333 = vunpack.c.l.b16 %v313
    %v334 = vunpack.c.l.b16 %v314
    %v335 = vpack.c.b16 %v328, %v327
    %v336 = vpack.c.b16 %v330, %v329
    %v337 = vpack.c.b16 %v332, %v331
    %v338 = vpack.c.b16 %v334, %v333
    %vm343 = vcmask 523264
    %v345 = vsel %vm343, %v306, 0
    %347 = vmatpush.bf16.msra.mxu0 0
    %348 = vmatpush.bf16.msra.mxu0 0
    %349 = vmatpush.bf16.msra.mxu0 0
    %350 = vmatpush.bf16.msra.mxu0 0
    %351 = vmatpush.bf16.msra.mxu0 %v338
    %352 = vmatpush.bf16.msra.mxu0 %v337
    %353 = vmatpush.bf16.msra.mxu0 %v336
    %354 = vmatpush.bf16.msra.mxu0 %v335
    %355 = vmatmul.bf16.gmra.mxu0 %v345
    %v356 = vpop.f32.mrf.mxu0
    %v357 = vadd.f32 %v317, %v356
    %v358 = vpop.f32.mrf.mxu0
    %359 = vdwg.mxu0
    %v360 = vpack.c.bf16 %v357, %v357
    %v362 = vrot.slane %v360, 3
    %vm363 = vcmask 1040384
    %v366 = vsel %vm363, %v360, %v362
    %vm367 = vcmask 1041409
    %v368 = vsel %vm367, %v360, %v362
    %v370 = vrot.slane %v368, 1
    %vm371 = vcmask 1042434
    %v372 = vsel %vm371, %v360, %v362
    %v374 = vrot.slane %v372, 2
    %vm375 = vcmask 1043459
    %v376 = vsel %vm375, %v360, %v362
    %v378 = vrot.slane %v376, 3
    %383 = vst [vmem:[#allocation4] sm:$0x1] %v366
    %384 = vst [vmem:[#allocation4 + $0x1] sm:$0x1] %v370
    %385 = vst [vmem:[#allocation4 + $0x2] sm:$0x1] %v374
    %386 = vst [vmem:[#allocation4 + $0x3] sm:$0x1] %v378
    // Predicated region
    $region34: #{pytorch_classifier_forward.1} parent=1 // pred_check
      _
    $region35: #{pytorch_classifier_forward.1} parent=1 // pred_check_branch
      %388 = sbr.rel (0) target = $region37
    $region36: #{pytorch_classifier_forward.1} parent=1 // pred_region
      // Predicated region
      $region38: #{pytorch_classifier_forward.1} parent=36 // pred_check
        _
      $region39: #{pytorch_classifier_forward.1} parent=36 // pred_check_branch
        %390 = sbr.rel (0) target = $region41
      $region40: #{pytorch_classifier_forward.1} parent=36 // pred_region
        // Predicated region
        $region42: #{pytorch_classifier_forward.1} parent=40 // pred_check
          _
        $region43: #{pytorch_classifier_forward.1} parent=40 // pred_check_branch
          %392 = sbr.rel target = $region45
        $region44: #{pytorch_classifier_forward.1} parent=40 // pred_region
          // Predicated region
          $region57: #{pytorch_classifier_forward.1} parent=44 // pred_check
            _
          $region58: #{pytorch_classifier_forward.1} parent=44 // pred_check_branch
            %408 = sbr.rel (0) target = $region60
          $region59: #{pytorch_classifier_forward.1} parent=44 // pred_region
            %s410 = ssub.s32 2, 1
            loop: start=0, step=1, limit=1
            $region61: #{pytorch_classifier_forward.1} parent=59 // loop_pre_header
              _
            $region62: #{pytorch_classifier_forward.1} parent=59 // loop_header
              %s412 = sphi 0, %s416
              %p413 = scmp.ge.s32.totalorder %s412, 1
              %s417 = sphi [#allocation4], [#allocation4]
              %s418 = sphi %s7, %s7
            $region63: #{pytorch_classifier_forward.1} parent=59 // loop_header_branch
              %415 = sbr.rel (%p413) target = $region67
            $region64: #{pytorch_classifier_forward.1} parent=59 // loop_body
              %v419 = vld [vmem:[%s417] sm:%s410]
              %420 = vst [vmem:[%s418] sm:%s410] %v419
            $region65: #{pytorch_classifier_forward.1} parent=59 // loop_footer
              %s416 = sadd.s32 1, %s412
            $region66: #{pytorch_classifier_forward.1} parent=59 // loop_footer_branch
              %411 = sbr.rel target = $region62
            $region67: #{pytorch_classifier_forward.1} parent=59 // loop_exit
              _
          $region60: #{pytorch_classifier_forward.1} parent=44 // pred_fallthru
            _
        $region45: #{pytorch_classifier_forward.1} parent=40 // pred_fallthru
          _
        // Predicated region
        $region46: #{pytorch_classifier_forward.1} parent=40 // pred_check
          _
        $region47: #{pytorch_classifier_forward.1} parent=40 // pred_check_branch
          %394 = sbr.rel (0) target = $region49
        $region48: #{pytorch_classifier_forward.1} parent=40 // pred_region
          %s396 = ssub.s32 2, 1
          loop: start=0, step=1, limit=1
          $region50: #{pytorch_classifier_forward.1} parent=48 // loop_pre_header
            _
          $region51: #{pytorch_classifier_forward.1} parent=48 // loop_header
            %s398 = sphi 0, %s402
            %p399 = scmp.ge.s32.totalorder %s398, 1
            %s403 = sphi [#allocation4], [#allocation4]
            %s404 = sphi %s7, %s7
          $region52: #{pytorch_classifier_forward.1} parent=48 // loop_header_branch
            %401 = sbr.rel (%p399) target = $region56
          $region53: #{pytorch_classifier_forward.1} parent=48 // loop_body
            %v405 = vld [vmem:[%s403] sm:%s396]
            %406 = vst [vmem:[%s404] sm:%s396] %v405
          $region54: #{pytorch_classifier_forward.1} parent=48 // loop_footer
            %s402 = sadd.s32 1, %s398
          $region55: #{pytorch_classifier_forward.1} parent=48 // loop_footer_branch
            %397 = sbr.rel target = $region51
          $region56: #{pytorch_classifier_forward.1} parent=48 // loop_exit
            _
        $region49: #{pytorch_classifier_forward.1} parent=40 // pred_fallthru
          _
      $region41: #{pytorch_classifier_forward.1} parent=36 // pred_fallthru
        _
      %421 = vnop
    $region37: #{pytorch_classifier_forward.1} parent=1 // pred_fallthru
      _
    // Predicated region
    $region68: #{pytorch_classifier_forward.1} parent=1 // pred_check
      _
    $region69: #{pytorch_classifier_forward.1} parent=1 // pred_check_branch
      %423 = sbr.rel (0) target = $region71
    $region70: #{pytorch_classifier_forward.1} parent=1 // pred_region
      _
    $region71: #{pytorch_classifier_forward.1} parent=1 // pred_fallthru
      _
    %424 = vsyncpa [#allocation3], 1

</llo_original>
